<compile_context>
chip_gen: v5e
topology: v5e:2x2
jax: 0.10.0
libtpu: 0.0.40
codegen_flags: <defaults>
</compile_context>

<pallas_src>
import jax
import jax.numpy as jnp
from jax.experimental import pallas as pl
from jax.experimental.pallas import tpu as pltpu


# ---------------- kernel 1: excitation (tiny, runs once, no grid) ----------------
def _excite_kernel(pooled_ref, w1_ref, w2_ref, s_ref):
    # conv2d_1 (4x4 kernel over the 4x4 pooled input, no padding) == dense matmul
    h = jnp.dot(pooled_ref[...], w1_ref[...], preferred_element_type=jnp.float32)
    # LeakyReLU(negative_slope=0.2)
    h = jnp.where(h > 0, h, 0.2 * h)
    # conv2d_2 (1x1 kernel) == dense matmul
    y = jnp.dot(h, w2_ref[...], preferred_element_type=jnp.float32)
    # Sigmoid excitation, shape (N, C_high)
    s_ref[...] = jax.nn.sigmoid(y)


# ---------------- kernel 2: modulation (HBM-bandwidth-bound streaming) ------------
def _modulate_kernel(s_ref, xh_ref, out_ref):
    # (ROW_TILE, HW_TILE) * (ROW_TILE, 1) lane-broadcast multiply.
    out_ref[...] = (xh_ref[...] * s_ref[...]).astype(out_ref.dtype)


def _round_up(x, m):
    return ((x + m - 1) // m) * m


def _pick_tile(total, align, max_tile):
    """Largest multiple of `align` that divides `total` and is <= max_tile.
    `total` must already be a multiple of `align` (the wrapper pads)."""
    tile = min(max_tile, total)
    tile -= tile % align
    tile = max(tile, align)
    while total % tile != 0:
        tile -= align
    return tile


def _device_is_v5e():
    # bf16 VALU is absent on v5e -> keep the gate in f32 there.
    try:
        kind = jax.devices()[0].device_kind.lower()
        return ("v5 lite" in kind) or ("v5e" in kind)
    except Exception:
        return False


def prepare_sle_weights(w1_torch, w2_torch):
    """Flatten PyTorch OIHW conv weights into matmul weights.  Call ONCE
    (outside the per-forward path) and reuse the results."""
    o1, c_low, kh, kw = w1_torch.shape
    # out1[n,o] = sum_{c,i,j} w1[o,c,i,j] * pooled[n,c,i,j]
    w1 = jnp.transpose(w1_torch.reshape(o1, c_low * kh * kw), (1, 0)).astype(jnp.float32)
    c_high, mid = w2_torch.shape[0], w2_torch.shape[1]
    # out2[n,o] = sum_k w2[o,k,0,0] * h[n,k]
    w2 = jnp.transpose(w2_torch.reshape(c_high, mid), (1, 0)).astype(jnp.float32)
    return w1, w2


def sle_forward(x_low, x_high, w1_flat, w2_flat, *, donate_x_high=False):
    """x_low: (N, C_low, Hl, Wl), x_high: (N, C_high, Hh, Wh) (NCHW).
    w1_flat: (C_low*16, 256), w2_flat: (256, C_high) from prepare_sle_weights().
    Set donate_x_high=True only if the caller no longer needs x_high."""
    N, C_low, Hl, Wl = x_low.shape
    Nh, C_high, Hh, Wh = x_high.shape
    assert N == Nh
    assert Hl % 4 == 0 and Wl % 4 == 0, "adaptive pool implemented for divisible sizes"
    # TODO(synk): general AdaptiveAvgPool2d with non-divisible H/W (ragged bins) not implemented.

    # --- glue: AdaptiveAvgPool2d((4,4)) == block mean when H,W divisible by 4 ---
    pooled = (x_low.astype(jnp.float32)
              .reshape(N, C_low, 4, Hl // 4, 4, Wl // 4).mean(axis=(3, 5)))
    pooled_flat = pooled.reshape(N, C_low * 16)

    # --- kernel 1: excitation gate s = sigmoid(lrelu(pooled @ W1) @ W2) : (N, C_high) ---
    s = pl.pallas_call(
        _excite_kernel,
        out_shape=jax.ShapeDtypeStruct((N, C_high), jnp.float32),
        in_specs=[pl.BlockSpec(memory_space=pltpu.MemorySpace.VMEM)] * 3,
        out_specs=pl.BlockSpec(memory_space=pltpu.MemorySpace.VMEM),
    )(pooled_flat, w1_flat, w2_flat)

    # Cast the gate ONCE to the slab dtype so the hot loop multiplies natively
    # (bf16 VALU on v6e/v7x); keep f32 on v5e.
    itemsize = jnp.dtype(x_high.dtype).itemsize
    if (jnp.issubdtype(x_high.dtype, jnp.floating) and itemsize < 4
            and not _device_is_v5e()):
        s = s.astype(x_high.dtype)

    # --- kernel 2: tiled, double-buffered, lane-dense modulation of x_high ---
    rows, hw = N * C_high, Hh * Wh
    sub = max(8, 32 // itemsize)                 # dtype-aware sublane packing: 8/16/32
    rows_p, hw_p = _round_up(rows, sub), _round_up(hw, 128)

    xh2d = x_high.reshape(rows, hw)              # native dtype: minimal HBM traffic
    s_col = s.reshape(rows, 1)
    padded = (rows_p != rows) or (hw_p != hw)
    if padded:
        # Pad to lane/sublane-dense extents so every tile stays unmasked and
        # bounded (no VMEM-busting full-row fallback); slice back afterwards.
        xh2d = jnp.pad(xh2d, ((0, rows_p - rows), (0, hw_p - hw)))
        s_col = jnp.pad(s_col, ((0, rows_p - rows), (0, 0)))

    # Tile picking: lane-dense hw tiles up to 4096; row tile sized so one block is
    # <= ~8 MiB.  That amortizes the ~0.35us per-grid-step overhead on v7x's
    # ~3.2 TB/s HBM while keeping 2x(in+out) double buffers well under 64 MiB VMEM.
    max_block_bytes = 8 * 1024 * 1024
    hw_tile = _pick_tile(hw_p, 128, 4096)
    row_cap = min(512, max(sub, max_block_bytes // (hw_tile * itemsize)))
    row_cap = max(sub, (row_cap // sub) * sub)
    row_tile = _pick_tile(rows_p, sub, row_cap)

    # v7x has 2 TensorCores: ensure at least one "parallel" axis has >= 2 blocks.
    if rows_p // row_tile == 1 and hw_p // hw_tile == 1:
        if hw_tile % 256 == 0 and hw_p % (hw_tile // 2) == 0:
            hw_tile //= 2
        elif row_tile % (2 * sub) == 0 and rows_p % (row_tile // 2) == 0:
            row_tile //= 2

    grid = (rows_p // row_tile, hw_p // hw_tile)

    # Explicit scoped-VMEM budget: 2x(in + out + gate) double buffers + margin.
    # Floor at 32 MiB (safe on all gens), cap at 48 MiB (headroom on v7x's 64 MiB).
    block_bytes = row_tile * hw_tile * itemsize
    s_block_bytes = row_tile * jnp.dtype(s_col.dtype).itemsize
    vmem_limit = int(min(48 << 20,
                         max(2 * (2 * block_bytes + s_block_bytes) + (2 << 20),
                             32 << 20)))

    cost = pl.CostEstimate(
        flops=rows_p * hw_p,
        transcendentals=0,
        bytes_accessed=2 * rows_p * hw_p * itemsize
        + rows_p * jnp.dtype(s_col.dtype).itemsize,
    )

    # Only alias the big input into the output when the caller declares it dead;
    # otherwise XLA would have to insert a defensive copy of the whole tensor.
    io_aliases = {1: 0} if donate_x_high else {}

    out2d = pl.pallas_call(
        _modulate_kernel,
        out_shape=jax.ShapeDtypeStruct((rows_p, hw_p), x_high.dtype),
        grid=grid,
        in_specs=[
            # Gate block index constant over inner j -> no re-DMA per hw step.
            pl.BlockSpec((row_tile, 1), lambda i, j: (i, 0)),
            pl.BlockSpec((row_tile, hw_tile), lambda i, j: (i, j)),
        ],
        out_specs=pl.BlockSpec((row_tile, hw_tile), lambda i, j: (i, j)),
        compiler_params=pltpu.CompilerParams(
            dimension_semantics=("parallel", "parallel"),
            vmem_limit_bytes=vmem_limit,
        ),
        cost_estimate=cost,
        input_output_aliases=io_aliases,
    )(s_col, xh2d)

    if padded:
        out2d = out2d[:rows, :hw]
    return out2d.reshape(N, C_high, Hh, Wh)


def sle_reference(x_low, x_high, w1_torch, w2_torch):
    """Plain-JAX reference for correctness check (uses original OIHW weights)."""
    N, C_low, Hl, Wl = x_low.shape
    pooled = x_low.reshape(N, C_low, 4, Hl // 4, 4, Wl // 4).mean(axis=(3, 5))
    h = jnp.einsum("ncij,ocij->no", pooled, w1_torch)
    h = jnp.where(h > 0, h, 0.2 * h)
    y = jnp.einsum("nk,ok->no", h, w2_torch[:, :, 0, 0])
    s = jax.nn.sigmoid(y)
    return x_high * s[:, :, None, None]


if __name__ == "__main__":
    key = jax.random.PRNGKey(0)
    k1, k2, k3, k4 = jax.random.split(key, 4)

    # small shapes consistent with the module
    N = 2
    C_low = 8          # input_low_res_featureMaps
    C_high = 16        # input_high_res_featureMaps
    Hl = Wl = 16       # low-res spatial
    Hh = Wh = 32       # high-res spatial

    x_low = jax.random.normal(k1, (N, C_low, Hl, Wl), dtype=jnp.float32)
    x_high = jax.random.normal(k2, (N, C_high, Hh, Wh), dtype=jnp.float32)

    # deterministic synthetic conv weights (PyTorch OIHW layout)
    bound1 = 1.0 / (C_low * 16) ** 0.5
    w1_torch = jax.random.uniform(k3, (256, C_low, 4, 4), jnp.float32, -bound1, bound1)
    bound2 = 1.0 / 256.0 ** 0.5
    w2_torch = jax.random.uniform(k4, (C_high, 256, 1, 1), jnp.float32, -bound2, bound2)

    # weight flattening hoisted out of the forward path (done once)
    w1_flat, w2_flat = prepare_sle_weights(w1_torch, w2_torch)

    out = sle_forward(x_low, x_high, w1_flat, w2_flat)
    out = jax.block_until_ready(out)

    ref = sle_reference(x_low, x_high, w1_torch, w2_torch)
    assert out.shape == (N, C_high, Hh, Wh)
    assert out.dtype == x_high.dtype
    assert jnp.allclose(out, ref, atol=1e-5, rtol=1e-5), "mismatch vs reference"

    print("KERNEL_OK")
</pallas_src>

<mosaic_0001>
module attributes {stable_mosaic.version = 11 : i64} {
  func.func @_excite_kernel(%arg0: memref<2x128xf32, #tpu.memory_space<vmem>>, %arg1: memref<128x256xf32, #tpu.memory_space<vmem>>, %arg2: memref<256x16xf32, #tpu.memory_space<vmem>>, %arg3: memref<2x16xf32, #tpu.memory_space<vmem>>) attributes {dimension_semantics = [], scalar_prefetch = 0 : i64, scratch_operands = 0 : i64, tpu.core_type = #tpu.core_type<tc>} {
    %c0 = arith.constant 0 : index
    %c0_0 = arith.constant 0 : index
    %0 = vector.load %arg0[%c0, %c0_0] : memref<2x128xf32, #tpu.memory_space<vmem>>, vector<2x128xf32>
    %c0_1 = arith.constant 0 : index
    %c0_2 = arith.constant 0 : index
    %1 = vector.load %arg1[%c0_1, %c0_2] : memref<128x256xf32, #tpu.memory_space<vmem>>, vector<128x256xf32>
    %cst = arith.constant dense<0.000000e+00> : vector<2x256xf32>
    %2 = tpu.matmul %0, %1, %cst {dimension_numbers = #tpu.dot_dimension_numbers<[1], [0], [0], [1], [0, 0, 1, 1], [], []>} : vector<2x128xf32>, vector<128x256xf32>, vector<2x256xf32> -> vector<2x256xf32>
    %cst_3 = arith.constant 0.000000e+00 : f32
    %3 = vector.broadcast %cst_3 : f32 to vector<2x256xf32>
    %4 = arith.cmpf ogt, %2, %3 : vector<2x256xf32>
    %cst_4 = arith.constant 2.000000e-01 : f32
    %5 = vector.broadcast %cst_4 : f32 to vector<2x256xf32>
    %6 = arith.mulf %5, %2 : vector<2x256xf32>
    %7 = arith.select %4, %2, %6 : vector<2x256xi1>, vector<2x256xf32>
    %c0_5 = arith.constant 0 : index
    %c0_6 = arith.constant 0 : index
    %8 = vector.load %arg2[%c0_5, %c0_6] : memref<256x16xf32, #tpu.memory_space<vmem>>, vector<256x16xf32>
    %cst_7 = arith.constant dense<0.000000e+00> : vector<2x16xf32>
    %9 = tpu.matmul %7, %8, %cst_7 {dimension_numbers = #tpu.dot_dimension_numbers<[1], [0], [0], [1], [0, 0, 1, 1], [], []>} : vector<2x256xf32>, vector<256x16xf32>, vector<2x16xf32> -> vector<2x16xf32>
    %10 = arith.negf %9 : vector<2x16xf32>
    %11 = math.exp %10 : vector<2x16xf32>
    %cst_8 = arith.constant 1.000000e+00 : f32
    %12 = vector.broadcast %cst_8 : f32 to vector<2x16xf32>
    %13 = arith.addf %12, %11 : vector<2x16xf32>
    %14 = arith.divf %12, %13 : vector<2x16xf32>
    %c0_9 = arith.constant 0 : index
    %c0_10 = arith.constant 0 : index
    %15 = vector.load %arg3[%c0_9, %c0_10] : memref<2x16xf32, #tpu.memory_space<vmem>>, vector<2x16xf32>
    tpu.vector_store %arg3[%c0_9, %c0_10], %14 {strides = array<i32>} : memref<2x16xf32, #tpu.memory_space<vmem>>, vector<2x16xf32>,
    return
  }
}

</mosaic_0001>

<llo_original>
// kernel: tpu_custom_call.1
$region0: #{tpu_custom_call.1}
  #allocation0 [shape = 'u32[]', space=smem, size = 0x4, offset = 0x4, fixed_abs, tag = 'smem constant byte address 0x4 - core index']
  #allocation1 [shape = 'u32[72,128]{1,0:T(1,128)}', space=vmem, size = 0x9000, scoped, tag = 'internal scratch']
  %s0 = inlined_call_operand.vmem [shape: f32[2,128], index: 0, kind: input, shape index: {}]
  %s1 = inlined_call_operand.vmem [shape: f32[128,256], index: 1, kind: input, shape index: {}]
  %s2 = inlined_call_operand.vmem [shape: f32[256,16], index: 2, kind: input, shape index: {}]
  %s3 = inlined_call_operand.hbm [shape: f32[2,16], index: 3, kind: output, shape index: {}]
  %s4 = sld [smem:[#allocation0]]
  $region22: #{tpu_custom_call.1} parent=0
    _
  %s6 = ssub.s32 1, %s4
  %s7 = scalar_select 0, %s6, %s4
  $region1: #{tpu_custom_call.1} parent=0
    #allocation2 [shape = 'u8[1024]{0}', space=vmem, size = 0x400, scoped, tag = 'output window, operand 0, single buffered']
    #allocation3 [shape = 's32[1]{0}', space=sflag, size = 0x4, scoped, tag = 'scoped memory for tpu_custom_call.1']
    %8 = vsyncpa [#allocation3], 0
    // Predicated region
    $region2: #{tpu_custom_call.1} parent=1 // pred_check
      _
    $region3: #{tpu_custom_call.1} parent=1 // pred_check_branch
      %10 = sbr.rel (0) target = $region5
    $region4: #{tpu_custom_call.1} parent=1 // pred_region
      _
    $region5: #{tpu_custom_call.1} parent=1 // pred_fallthru
      _
    // Predicated region
    $region6: #{tpu_custom_call.1} parent=1 // pred_check
      _
    $region7: #{tpu_custom_call.1} parent=1 // pred_check_branch
      %12 = sbr.rel (0) target = $region9
    $region8: #{tpu_custom_call.1} parent=1 // pred_region
      _
    $region9: #{tpu_custom_call.1} parent=1 // pred_fallthru
      _
    // Predicated region
    $region10: #{tpu_custom_call.1} parent=1 // pred_check
      _
    $region11: #{tpu_custom_call.1} parent=1 // pred_check_branch
      %14 = sbr.rel (0) target = $region13
    $region12: #{tpu_custom_call.1} parent=1 // pred_region
      _
    $region13: #{tpu_custom_call.1} parent=1 // pred_fallthru
      _
    %v15 = vld [vmem:[%s0] sm:$0x3]
    %v16 = vld [vmem:[%s1] sm:$0xff]
    %v17 = vld [vmem:[%s1 + $0x8] sm:$0xff]
    %v18 = vld [vmem:[%s1 + $0x10] sm:$0xff]
    %v19 = vld [vmem:[%s1 + $0x18] sm:$0xff]
    %v20 = vld [vmem:[%s1 + $0x20] sm:$0xff]
    %v21 = vld [vmem:[%s1 + $0x28] sm:$0xff]
    %v22 = vld [vmem:[%s1 + $0x30] sm:$0xff]
    %v23 = vld [vmem:[%s1 + $0x38] sm:$0xff]
    %v24 = vld [vmem:[%s1 + $0x40] sm:$0xff]
    %v25 = vld [vmem:[%s1 + $0x48] sm:$0xff]
    %v26 = vld [vmem:[%s1 + $0x50] sm:$0xff]
    %v27 = vld [vmem:[%s1 + $0x58] sm:$0xff]
    %v28 = vld [vmem:[%s1 + $0x60] sm:$0xff]
    %v29 = vld [vmem:[%s1 + $0x68] sm:$0xff]
    %v30 = vld [vmem:[%s1 + $0x70] sm:$0xff]
    %v31 = vld [vmem:[%s1 + $0x78] sm:$0xff]
    %v32 = vld [vmem:[%s1 + $0x80] sm:$0xff]
    %v33 = vld [vmem:[%s1 + $0x88] sm:$0xff]
    %v34 = vld [vmem:[%s1 + $0x90] sm:$0xff]
    %v35 = vld [vmem:[%s1 + $0x98] sm:$0xff]
    %v36 = vld [vmem:[%s1 + $0xa0] sm:$0xff]
    %v37 = vld [vmem:[%s1 + $0xa8] sm:$0xff]
    %v38 = vld [vmem:[%s1 + $0xb0] sm:$0xff]
    %v39 = vld [vmem:[%s1 + $0xb8] sm:$0xff]
    %v40 = vld [vmem:[%s1 + $0xc0] sm:$0xff]
    %v41 = vld [vmem:[%s1 + $0xc8] sm:$0xff]
    %v42 = vld [vmem:[%s1 + $0xd0] sm:$0xff]
    %v43 = vld [vmem:[%s1 + $0xd8] sm:$0xff]
    %v44 = vld [vmem:[%s1 + $0xe0] sm:$0xff]
    %v45 = vld [vmem:[%s1 + $0xe8] sm:$0xff]
    %v46 = vld [vmem:[%s1 + $0xf0] sm:$0xff]
    %v47 = vld [vmem:[%s1 + $0xf8] sm:$0xff]
    %48 = vmatpush.msra.mxu0 %v46
    %49 = vmatpush.msra.mxu0 %v44
    %50 = vmatpush.msra.mxu0 %v42
    %51 = vmatpush.msra.mxu0 %v40
    %52 = vmatpush.msra.mxu0 %v38
    %53 = vmatpush.msra.mxu0 %v36
    %54 = vmatpush.msra.mxu0 %v34
    %55 = vmatpush.msra.mxu0 %v32
    %56 = vmatpush.msra.mxu0 %v30
    %57 = vmatpush.msra.mxu0 %v28
    %58 = vmatpush.msra.mxu0 %v26
    %59 = vmatpush.msra.mxu0 %v24
    %60 = vmatpush.msra.mxu0 %v22
    %61 = vmatpush.msra.mxu0 %v20
    %62 = vmatpush.msra.mxu0 %v18
    %63 = vmatpush.msra.mxu0 %v16
    %64 = vmatmul.f32.gmra.mxu0 %v15
    %v65 = vpop.f32.mrf.mxu0
    %v66 = vadd.f32 0.0, %v65
    %67 = vdwg.mxu0
    %68 = vmatpush.msra.mxu0 %v47
    %69 = vmatpush.msra.mxu0 %v45
    %70 = vmatpush.msra.mxu0 %v43
    %71 = vmatpush.msra.mxu0 %v41
    %72 = vmatpush.msra.mxu0 %v39
    %73 = vmatpush.msra.mxu0 %v37
    %74 = vmatpush.msra.mxu0 %v35
    %75 = vmatpush.msra.mxu0 %v33
    %76 = vmatpush.msra.mxu0 %v31
    %77 = vmatpush.msra.mxu0 %v29
    %78 = vmatpush.msra.mxu0 %v27
    %79 = vmatpush.msra.mxu0 %v25
    %80 = vmatpush.msra.mxu0 %v23
    %81 = vmatpush.msra.mxu0 %v21
    %82 = vmatpush.msra.mxu0 %v19
    %83 = vmatpush.msra.mxu0 %v17
    %84 = vmatmul.f32.gmra.mxu0 %v15
    %v85 = vpop.f32.mrf.mxu0
    %v86 = vadd.f32 0.0, %v85
    %87 = vdwg.mxu0
    %vm88 = vcmp.gt.f32.partialorder %v66, 0.0
    %vm89 = vcmp.gt.f32.partialorder %v86, 0.0
    %v90 = vmul.f32 %v66, 0.2
    %v91 = vmul.f32 %v86, 0.2
    %v92 = vsel %vm88, %v66, %v90
    %v93 = vsel %vm89, %v86, %v91
    %v94 = vld [vmem:[%s2] sm:$0xff]
    %v95 = vld [vmem:[%s2 + $0x8] sm:$0xff]
    %v96 = vld [vmem:[%s2 + $0x10] sm:$0xff]
    %v97 = vld [vmem:[%s2 + $0x18] sm:$0xff]
    %v98 = vld [vmem:[%s2 + $0x20] sm:$0xff]
    %v99 = vld [vmem:[%s2 + $0x28] sm:$0xff]
    %v100 = vld [vmem:[%s2 + $0x30] sm:$0xff]
    %v101 = vld [vmem:[%s2 + $0x38] sm:$0xff]
    %v102 = vld [vmem:[%s2 + $0x40] sm:$0xff]
    %v103 = vld [vmem:[%s2 + $0x48] sm:$0xff]
    %v104 = vld [vmem:[%s2 + $0x50] sm:$0xff]
    %v105 = vld [vmem:[%s2 + $0x58] sm:$0xff]
    %v106 = vld [vmem:[%s2 + $0x60] sm:$0xff]
    %v107 = vld [vmem:[%s2 + $0x68] sm:$0xff]
    %v108 = vld [vmem:[%s2 + $0x70] sm:$0xff]
    %v109 = vld [vmem:[%s2 + $0x78] sm:$0xff]
    %v110 = vld [vmem:[%s2 + $0x80] sm:$0xff]
    %v111 = vld [vmem:[%s2 + $0x88] sm:$0xff]
    %v112 = vld [vmem:[%s2 + $0x90] sm:$0xff]
    %v113 = vld [vmem:[%s2 + $0x98] sm:$0xff]
    %v114 = vld [vmem:[%s2 + $0xa0] sm:$0xff]
    %v115 = vld [vmem:[%s2 + $0xa8] sm:$0xff]
    %v116 = vld [vmem:[%s2 + $0xb0] sm:$0xff]
    %v117 = vld [vmem:[%s2 + $0xb8] sm:$0xff]
    %v118 = vld [vmem:[%s2 + $0xc0] sm:$0xff]
    %v119 = vld [vmem:[%s2 + $0xc8] sm:$0xff]
    %v120 = vld [vmem:[%s2 + $0xd0] sm:$0xff]
    %v121 = vld [vmem:[%s2 + $0xd8] sm:$0xff]
    %v122 = vld [vmem:[%s2 + $0xe0] sm:$0xff]
    %v123 = vld [vmem:[%s2 + $0xe8] sm:$0xff]
    %v124 = vld [vmem:[%s2 + $0xf0] sm:$0xff]
    %v125 = vld [vmem:[%s2 + $0xf8] sm:$0xff]
    %126 = vmatpush.msra.mxu0 %v109
    %127 = vmatpush.msra.mxu0 %v108
    %128 = vmatpush.msra.mxu0 %v107
    %129 = vmatpush.msra.mxu0 %v106
    %130 = vmatpush.msra.mxu0 %v105
    %131 = vmatpush.msra.mxu0 %v104
    %132 = vmatpush.msra.mxu0 %v103
    %133 = vmatpush.msra.mxu0 %v102
    %134 = vmatpush.msra.mxu0 %v101
    %135 = vmatpush.msra.mxu0 %v100
    %136 = vmatpush.msra.mxu0 %v99
    %137 = vmatpush.msra.mxu0 %v98
    %138 = vmatpush.msra.mxu0 %v97
    %139 = vmatpush.msra.mxu0 %v96
    %140 = vmatpush.msra.mxu0 %v95
    %141 = vmatpush.msra.mxu0 %v94
    %142 = vmatmul.f32.gmra.mxu0 %v92
    %v143 = vpop.f32.mrf.mxu0
    %v144 = vadd.f32 0.0, %v143
    %145 = vdwg.mxu0
    %146 = vmatpush.msra.mxu0 %v125
    %147 = vmatpush.msra.mxu0 %v124
    %148 = vmatpush.msra.mxu0 %v123
    %149 = vmatpush.msra.mxu0 %v122
    %150 = vmatpush.msra.mxu0 %v121
    %151 = vmatpush.msra.mxu0 %v120
    %152 = vmatpush.msra.mxu0 %v119
    %153 = vmatpush.msra.mxu0 %v118
    %154 = vmatpush.msra.mxu0 %v117
    %155 = vmatpush.msra.mxu0 %v116
    %156 = vmatpush.msra.mxu0 %v115
    %157 = vmatpush.msra.mxu0 %v114
    %158 = vmatpush.msra.mxu0 %v113
    %159 = vmatpush.msra.mxu0 %v112
    %160 = vmatpush.msra.mxu0 %v111
    %161 = vmatpush.msra.mxu0 %v110
    %162 = vmatmul.f32.gmra.mxu0 %v93
    %v163 = vpop.f32.mrf.mxu0
    %v164 = vadd.f32 %v144, %v163
    %165 = vdwg.mxu0
    %v166 = vxor.u32 %v164, 2147483648
    %v167 = vmul.f32 %v166, 1.442695
    %v168 = vpow.pop %v167
    %v169 = vadd.f32 %v168, 1.0
    %v170 = vrcp.pop %v169
    %v171 = vmul.f32 %v169, %v170
    %v172 = vsub.f32 1.0, %v171
    %v173 = vmul.f32 %v170, %v172
    %v174 = vadd.f32 %v170, %v173
    %vm175 = vweird.f32 %v169
    %vm176 = vweird.f32 %v170
    %vm177 = vmor %vm175, %vm176
    %v178 = vsel %vm177, %v170, %v174
    %v179 = vand.u32 2147483647, %v169
    %vm180 = vcmp.eq.f32.partialorder %v179, 8.507059e+37
    %v181 = vand.u32 %v169, 2147483648
    %v182 = vor.u32 1.1754944e-38, %v181
    %v183 = vsel %vm180, %v182, %v178
    %v184 = vmul.f32 1.0, %v183
    %vm185 = vcmask 123904
    %186 = vst.msk [vmem:[#allocation2] sm:$0x3] %vm185, %v184
    // Predicated region
    $region14: #{tpu_custom_call.1} parent=1 // pred_check
      _
    $region15: #{tpu_custom_call.1} parent=1 // pred_check_branch
      %188 = sbr.rel (0) target = $region17
    $region16: #{tpu_custom_call.1} parent=1 // pred_region
      %190 = vsyncadd [#allocation3], 0
      %s192 = sshll.u32 [#allocation2], 4
      %s193 = int_to_ptr.vmem [resolvable:$true] %s192
      %s194 = sshll.u32 %s3, 4
      %s195 = int_to_ptr.hbm [resolvable:$true] %s194
      %197 = dma.vmem_to_hbm [thread:$0]  %s193, 32, %s195, [#allocation3]
    $region17: #{tpu_custom_call.1} parent=1 // pred_fallthru
      _
    // Predicated region
    $region18: #{tpu_custom_call.1} parent=1 // pred_check
      _
    $region19: #{tpu_custom_call.1} parent=1 // pred_check_branch
      %199 = sbr.rel (0) target = $region21
    $region20: #{tpu_custom_call.1} parent=1 // pred_region
      %201 = dma.done [#allocation3], 32
    $region21: #{tpu_custom_call.1} parent=1 // pred_fallthru
      _
    %202 = vsyncpa [#allocation3], 1

</llo_original>
